<compile_context>
chip_gen: v6e
topology: v6e:2x2x1
jax: 0.10.0
libtpu: 0.0.40
codegen_flags: <defaults>
</compile_context>

<pallas_src>
import functools

import jax
import jax.numpy as jnp
from jax.experimental import pallas as pl
from jax.experimental.pallas import tpu as pltpu


def _min_sublane(dtype):
    # f32 -> 8, bf16/f16 -> 16, int8/fp8 -> 32 (sub-32-bit packs along sublanes).
    itemsize = jnp.dtype(dtype).itemsize
    return max(8, 32 // itemsize)


def _round_up(x, m):
    return (x + m - 1) // m * m


def _vae_loss_partial_kernel(logits_ref, target_ref, partial_ref, *,
                             pos_weight, rows_total, tile_m, need_mask):
    x = logits_ref[...].astype(jnp.float32)
    y = target_ref[...].astype(jnp.float32)

    # Numerically-stable BCE-with-logits (PyTorch semantics, scalar pos_weight):
    #   l = pos_weight * y * softplus(-x) + (1 - y) * softplus(x)
    #     = softplus(x) + y * (pos_weight * softplus(-x) - softplus(x))
    # exp/log1p land on the EUP slot -> effectively free under the HBM roofline.
    sp_pos = jnp.maximum(x, 0.0) + jnp.log1p(jnp.exp(-jnp.abs(x)))  # softplus(x)
    sp_neg = sp_pos - x                                             # softplus(-x)
    per_elem = sp_pos + y * (jnp.float32(pos_weight) * sp_neg - sp_pos)

    if need_mask:
        # Last row-block may read past M; zero the out-of-range rows.
        row = (pl.program_id(0) * tile_m
               + jax.lax.broadcasted_iota(jnp.int32, per_elem.shape, 0))
        per_elem = jnp.where(row < rows_total, per_elem, 0.0)

    # Sublane-only reduction: one lane-dense (1, N) partial row per grid step.
    # The cross-lane reduce to a scalar happens once, in the wrapper.
    partial_ref[...] = jnp.sum(per_elem, axis=0, keepdims=True)


def vae_loss(logits, target, kld, *, alpha=1.0, pos_weight=50.0, tile_m=None):
    """Pallas implementation of VAELoss.forward((logits, kld), target)."""
    assert logits.shape == target.shape
    assert logits.ndim == 2
    M, N = logits.shape

    sub = max(_min_sublane(logits.dtype), _min_sublane(target.dtype))
    max_itemsize = max(jnp.dtype(logits.dtype).itemsize,
                       jnp.dtype(target.dtype).itemsize)

    if tile_m is None:
        # Cap each input tile at ~3 MiB: 2 inputs x 2 pipeline buffers = 12 MiB,
        # safely inside the default scoped-VMEM limit on v5e (16 MiB), v6e and
        # v7x (32 MiB), while keeping per-step grid overhead negligible.
        cap_rows = max(sub, (3 << 20) // max(1, N * max_itemsize))
        tile_m = min(512, cap_rows)
    tile_m = max(sub, (tile_m // sub) * sub)          # sublane-aligned
    tile_m = min(tile_m, _round_up(M, sub))           # don't exceed the array

    grid_m = pl.cdiv(M, tile_m)
    need_mask = (M % tile_m) != 0

    kernel = functools.partial(
        _vae_loss_partial_kernel,
        pos_weight=float(pos_weight),
        rows_total=M,
        tile_m=tile_m,
        need_mask=need_mask,
    )

    partials = pl.pallas_call(
        kernel,
        out_shape=jax.ShapeDtypeStruct((grid_m, N), jnp.float32),
        grid_spec=pltpu.PrefetchScalarGridSpec(
            num_scalar_prefetch=0,
            grid=(grid_m,),
            in_specs=[
                pl.BlockSpec((tile_m, N), lambda i: (i, 0)),
                pl.BlockSpec((tile_m, N), lambda i: (i, 0)),
            ],
            out_specs=pl.BlockSpec((1, N), lambda i: (i, 0)),
        ),
        compiler_params=pltpu.CompilerParams(
            dimension_semantics=("parallel",),
        ),
    )(logits, target)

    # Tiny wrapper-side reduction + finalize (mean, + alpha * kld).
    bce_mean = jnp.sum(partials) / jnp.float32(M * N)
    return bce_mean + jnp.float32(alpha) * jnp.asarray(kld, jnp.float32)


def vae_loss_reference(logits, target, kld, *, alpha=1.0, pos_weight=50.0):
    x = logits.astype(jnp.float32)
    y = target.astype(jnp.float32)
    sp_pos = jnp.maximum(x, 0.0) + jnp.log1p(jnp.exp(-jnp.abs(x)))
    sp_neg = sp_pos - x
    per_elem = pos_weight * y * sp_neg + (1.0 - y) * sp_pos
    return jnp.mean(per_elem) + alpha * jnp.asarray(kld, jnp.float32)


if __name__ == "__main__":
    key = jax.random.PRNGKey(0)
    k1, k2, k3 = jax.random.split(key, 3)

    # Small synthetic shape: batch=16 rows, 256 feature logits, scalar KLD.
    M, N = 16, 256
    logits = jax.random.normal(k1, (M, N), dtype=jnp.float32) * 2.0
    target = (jax.random.uniform(k2, (M, N)) < 0.1).astype(jnp.float32)
    kld = jax.random.uniform(k3, (), dtype=jnp.float32)

    out = jax.block_until_ready(vae_loss(logits, target, kld,
                                         alpha=1.0, pos_weight=50.0))
    ref = vae_loss_reference(logits, target, kld, alpha=1.0, pos_weight=50.0)
    assert jnp.allclose(out, ref, rtol=1e-5, atol=1e-5), (out, ref)

    # bf16 inputs read directly by the kernel (no wrapper upcast / HBM copies).
    out_bf16 = jax.block_until_ready(
        vae_loss(logits.astype(jnp.bfloat16), target.astype(jnp.bfloat16), kld))
    ref_bf16 = vae_loss_reference(logits.astype(jnp.bfloat16),
                                  target.astype(jnp.bfloat16), kld)
    assert jnp.allclose(out_bf16, ref_bf16, rtol=1e-3, atol=1e-3), (out_bf16, ref_bf16)

    # Non-divisible M exercises the cdiv grid + in-kernel row mask.
    M2, N2 = 20, 384
    l2 = jax.random.normal(k1, (M2, N2), dtype=jnp.float32)
    t2 = (jax.random.uniform(k2, (M2, N2)) < 0.2).astype(jnp.float32)
    out2 = jax.block_until_ready(vae_loss(l2, t2, kld, tile_m=8))
    ref2 = vae_loss_reference(l2, t2, kld)
    assert jnp.allclose(out2, ref2, rtol=1e-5, atol=1e-5), (out2, ref2)

    print("KERNEL_OK")
</pallas_src>

<mosaic_0001>
module attributes {stable_mosaic.version = 11 : i64} {
  func.func @_vae_loss_partial_kernel(%arg0: i32, %arg1: memref<16x256xf32, #tpu.memory_space<vmem>>, %arg2: memref<16x256xf32, #tpu.memory_space<vmem>>, %arg3: memref<1x256xf32, #tpu.memory_space<vmem>>) attributes {dimension_semantics = [#tpu.dimension_semantics<parallel>], iteration_bounds = array<i64: 1>, scalar_prefetch = 0 : i64, scratch_operands = 0 : i64, tpu.core_type = #tpu.core_type<tc>, window_params = [{transform_indices = @transform_0, window_bounds = array<i64: 16, 256>}, {transform_indices = @transform_1, window_bounds = array<i64: 16, 256>}, {transform_indices = @transform_2, window_bounds = array<i64: 1, 256>}]} {
    %c0 = arith.constant 0 : index
    %c0_0 = arith.constant 0 : index
    %0 = vector.load %arg1[%c0, %c0_0] : memref<16x256xf32, #tpu.memory_space<vmem>>, vector<16x256xf32>
    %c0_1 = arith.constant 0 : index
    %c0_2 = arith.constant 0 : index
    %1 = vector.load %arg2[%c0_1, %c0_2] : memref<16x256xf32, #tpu.memory_space<vmem>>, vector<16x256xf32>
    %cst = arith.constant 0.000000e+00 : f32
    %2 = vector.broadcast %cst : f32 to vector<16x256xf32>
    %3 = arith.maximumf %0, %2 : vector<16x256xf32>
    %4 = math.absf %0 : vector<16x256xf32>
    %cst_3 = arith.constant 0.000000e+00 : f32
    %5 = vector.broadcast %cst_3 : f32 to vector<16x256xf32>
    %6 = arith.subf %5, %4 : vector<16x256xf32>
    %7 = math.exp %6 : vector<16x256xf32>
    %8 = math.log1p %7 : vector<16x256xf32>
    %9 = arith.addf %3, %8 : vector<16x256xf32>
    %10 = arith.subf %9, %0 : vector<16x256xf32>
    %cst_4 = arith.constant 5.000000e+01 : f32
    %11 = vector.broadcast %cst_4 : f32 to vector<16x256xf32>
    %12 = arith.mulf %11, %10 : vector<16x256xf32>
    %13 = arith.subf %12, %9 : vector<16x256xf32>
    %14 = arith.mulf %1, %13 : vector<16x256xf32>
    %15 = arith.addf %9, %14 : vector<16x256xf32>
    %cst_5 = arith.constant dense<0.000000e+00> : vector<256xf32>
    %16 = vector.multi_reduction <add>, %15, %cst_5 [0] : vector<16x256xf32> to vector<256xf32>
    %17 = vector.shape_cast %16 : vector<256xf32> to vector<1x256xf32>
    %c0_6 = arith.constant 0 : index
    %c0_7 = arith.constant 0 : index
    %18 = vector.load %arg3[%c0_6, %c0_7] : memref<1x256xf32, #tpu.memory_space<vmem>>, vector<1x256xf32>
    tpu.vector_store %arg3[%c0_6, %c0_7], %17 {strides = array<i32>} : memref<1x256xf32, #tpu.memory_space<vmem>>, vector<1x256xf32>,
    return
  }
  func.func @transform_0(%arg0: i32) -> (i32, i32) {
    %c0_i32 = arith.constant 0 : i32
    %c0_i32_0 = arith.constant 0 : i32
    return %arg0, %c0_i32 : i32, i32
  }
  func.func @transform_1(%arg0: i32) -> (i32, i32) {
    %c0_i32 = arith.constant 0 : i32
    %c0_i32_0 = arith.constant 0 : i32
    return %arg0, %c0_i32 : i32, i32
  }
  func.func @transform_2(%arg0: i32) -> (i32, i32) {
    %c0_i32 = arith.constant 0 : i32
    %c0_i32_0 = arith.constant 0 : i32
    return %arg0, %c0_i32 : i32, i32
  }
}

</mosaic_0001>

<llo_original>
// kernel: tpu_custom_call.1
$region0: #{tpu_custom_call.1}
  #allocation0 [shape = 'u32[]', space=smem, size = 0x4, offset = 0x4, fixed_abs, tag = 'smem constant byte address 0x4 - core index']
  #allocation1 [shape = 'u32[144,128]{1,0:T(1,128)}', space=vmem, size = 0x12000, scoped, tag = 'internal scratch']
  %s0 = inlined_call_operand.hbm [shape: f32[16,256], index: 0, kind: input, shape index: {}]
  %s1 = inlined_call_operand.hbm [shape: f32[16,256], index: 1, kind: input, shape index: {}]
  %s2 = inlined_call_operand.hbm [shape: f32[1,256], index: 2, kind: output, shape index: {}]
  %s3 = sld [smem:[#allocation0]]
  $region26: #{tpu_custom_call.1} parent=0
    _
  %s5 = ssub.s32 1, %s3
  %s6 = scalar_select 0, %s5, %s3
  $region1: #{tpu_custom_call.1} parent=0
    #allocation2 [shape = 'u8[16384]{0}', space=vmem, size = 0x4000, scoped, tag = 'input window, operand 0, single buffered']
    #allocation3 [shape = 's32[1]{0}', space=sflag, size = 0x4, scoped, tag = 'scoped memory for tpu_custom_call.1']
    #allocation4 [shape = 's32[1]{0}', space=sflag, size = 0x4, scoped, tag = 'scoped memory for tpu_custom_call.1']
    #allocation5 [shape = 'u8[16384]{0}', space=vmem, size = 0x4000, scoped, tag = 'input window, operand 1, single buffered']
    #allocation6 [shape = 's32[1]{0}', space=sflag, size = 0x4, scoped, tag = 'scoped memory for tpu_custom_call.1']
    #allocation7 [shape = 'u8[1024]{0}', space=vmem, size = 0x400, scoped, tag = 'output window, operand 0, single buffered']
    %7 = vsyncpa [#allocation3], 0
    %8 = vsyncpa [#allocation6], 0
    %9 = vsyncpa [#allocation4], 0
    // Predicated region
    $region2: #{tpu_custom_call.1} parent=1 // pred_check
      _
    $region3: #{tpu_custom_call.1} parent=1 // pred_check_branch
      %11 = sbr.rel (0) target = $region5
    $region4: #{tpu_custom_call.1} parent=1 // pred_region
      %s13 = ssub.s32 512, 512
      %14 = vsyncadd [#allocation3], %s13
      %s15 = sshll.u32 [#allocation2], 4
      %s16 = int_to_ptr.vmem [resolvable:$true] %s15
      %21 = dma.hbm_to_vmem [thread:$0]  %s0, 512, %s16, [#allocation3], 256, 256, 16
    $region5: #{tpu_custom_call.1} parent=1 // pred_fallthru
      _
    // Predicated region
    $region6: #{tpu_custom_call.1} parent=1 // pred_check
      _
    $region7: #{tpu_custom_call.1} parent=1 // pred_check_branch
      %23 = sbr.rel (0) target = $region9
    $region8: #{tpu_custom_call.1} parent=1 // pred_region
      %s25 = ssub.s32 512, 512
      %26 = vsyncadd [#allocation6], %s25
      %s27 = sshll.u32 [#allocation5], 4
      %s28 = int_to_ptr.vmem [resolvable:$true] %s27
      %33 = dma.hbm_to_vmem [thread:$0]  %s1, 512, %s28, [#allocation6], 256, 256, 16
    $region9: #{tpu_custom_call.1} parent=1 // pred_fallthru
      _
    // Predicated region
    $region10: #{tpu_custom_call.1} parent=1 // pred_check
      _
    $region11: #{tpu_custom_call.1} parent=1 // pred_check_branch
      %35 = sbr.rel (0) target = $region13
    $region12: #{tpu_custom_call.1} parent=1 // pred_region
      %36 = dma.done [#allocation3], 512
    $region13: #{tpu_custom_call.1} parent=1 // pred_fallthru
      _
    // Predicated region
    $region14: #{tpu_custom_call.1} parent=1 // pred_check
      _
    $region15: #{tpu_custom_call.1} parent=1 // pred_check_branch
      %38 = sbr.rel (0) target = $region17
    $region16: #{tpu_custom_call.1} parent=1 // pred_region
      %39 = dma.done [#allocation6], 512
    $region17: #{tpu_custom_call.1} parent=1 // pred_fallthru
      _
    %v40 = vld [vmem:[#allocation2] sm:$0xff]
    %v41 = vld [vmem:[#allocation2 + $0x8] sm:$0xff]
    %v42 = vld [vmem:[#allocation2 + $0x10] sm:$0xff]
    %v43 = vld [vmem:[#allocation2 + $0x18] sm:$0xff]
    %v44 = vld [vmem:[#allocation5] sm:$0xff]
    %v45 = vld [vmem:[#allocation5 + $0x8] sm:$0xff]
    %v46 = vld [vmem:[#allocation5 + $0x10] sm:$0xff]
    %v47 = vld [vmem:[#allocation5 + $0x18] sm:$0xff]
    %v48 = vmax.f32 %v40, 0.0
    %v49 = vmax.f32 %v41, 0.0
    %v50 = vmax.f32 %v42, 0.0
    %v51 = vmax.f32 %v43, 0.0
    %v52 = vand.u32 2147483647, %v40
    %v53 = vand.u32 2147483647, %v41
    %v54 = vand.u32 2147483647, %v42
    %v55 = vand.u32 2147483647, %v43
    %v56 = vsub.f32 0.0, %v52
    %v57 = vsub.f32 0.0, %v53
    %v58 = vsub.f32 0.0, %v54
    %v59 = vsub.f32 0.0, %v55
    %v60 = vmul.f32 %v56, 1.442695
    %v61 = vpow.pop %v60
    %v62 = vmul.f32 %v57, 1.442695
    %v63 = vpow.pop %v62
    %v64 = vmul.f32 %v58, 1.442695
    %v65 = vpow.pop %v64
    %v66 = vmul.f32 %v59, 1.442695
    %v67 = vpow.pop %v66
    %v68 = vadd.f32 %v61, 1.0
    %v69 = vlog2.pop %v68
    %v70 = vmul.f32 %v69, 0.6931472
    %v71 = vmul.f32 -0.5, %v61
    %v72 = vadd.f32 %v71, 1.0
    %v73 = vmul.f32 %v72, %v61
    %v74 = vand.u32 2147483647, %v61
    %vm75 = vcmp.lt.f32.partialorder %v74, 0.0004427343
    %v76 = vsel %vm75, %v73, %v70
    %v77 = vadd.f32 %v63, 1.0
    %v78 = vlog2.pop %v77
    %v79 = vmul.f32 %v78, 0.6931472
    %v80 = vmul.f32 -0.5, %v63
    %v81 = vadd.f32 %v80, 1.0
    %v82 = vmul.f32 %v81, %v63
    %v83 = vand.u32 2147483647, %v63
    %vm84 = vcmp.lt.f32.partialorder %v83, 0.0004427343
    %v85 = vsel %vm84, %v82, %v79
    %v86 = vadd.f32 %v65, 1.0
    %v87 = vlog2.pop %v86
    %v88 = vmul.f32 %v87, 0.6931472
    %v89 = vmul.f32 -0.5, %v65
    %v90 = vadd.f32 %v89, 1.0
    %v91 = vmul.f32 %v90, %v65
    %v92 = vand.u32 2147483647, %v65
    %vm93 = vcmp.lt.f32.partialorder %v92, 0.0004427343
    %v94 = vsel %vm93, %v91, %v88
    %v95 = vadd.f32 %v67, 1.0
    %v96 = vlog2.pop %v95
    %v97 = vmul.f32 %v96, 0.6931472
    %v98 = vmul.f32 -0.5, %v67
    %v99 = vadd.f32 %v98, 1.0
    %v100 = vmul.f32 %v99, %v67
    %v101 = vand.u32 2147483647, %v67
    %vm102 = vcmp.lt.f32.partialorder %v101, 0.0004427343
    %v103 = vsel %vm102, %v100, %v97
    %v104 = vadd.f32 %v48, %v76
    %v105 = vadd.f32 %v49, %v85
    %v106 = vadd.f32 %v50, %v94
    %v107 = vadd.f32 %v51, %v103
    %v108 = vsub.f32 %v104, %v40
    %v109 = vsub.f32 %v105, %v41
    %v110 = vsub.f32 %v106, %v42
    %v111 = vsub.f32 %v107, %v43
    %v112 = vmul.f32 %v108, 50.0
    %v113 = vmul.f32 %v109, 50.0
    %v114 = vmul.f32 %v110, 50.0
    %v115 = vmul.f32 %v111, 50.0
    %v116 = vsub.f32 %v112, %v104
    %v117 = vsub.f32 %v113, %v105
    %v118 = vsub.f32 %v114, %v106
    %v119 = vsub.f32 %v115, %v107
    %v120 = vmul.f32 %v44, %v116
    %v121 = vmul.f32 %v45, %v117
    %v122 = vmul.f32 %v46, %v118
    %v123 = vmul.f32 %v47, %v119
    %v124 = vadd.f32 %v104, %v120
    %v125 = vadd.f32 %v105, %v121
    %v126 = vadd.f32 %v106, %v122
    %v127 = vadd.f32 %v107, %v123
    %v128 = vadd.f32 %v124, %v126
    %v129 = vrot.slane %v128, 4
    %v130 = vadd.f32 %v128, %v129
    %v131 = vrot.slane %v130, 2
    %v132 = vadd.f32 %v130, %v131
    %v133 = vrot.slane %v132, 1
    %v134 = vadd.f32 %v132, %v133
    %v135 = vadd.f32 %v125, %v127
    %v136 = vrot.slane %v135, 4
    %v137 = vadd.f32 %v135, %v136
    %v138 = vrot.slane %v137, 2
    %v139 = vadd.f32 %v137, %v138
    %v140 = vrot.slane %v139, 1
    %v141 = vadd.f32 %v139, %v140
    %v144 = vcombine.low %v134, %v141
    %v146 = vunpack.c.l.s4 1966171168
    %v147 = vunpack.c.0.s8 %v146
    %v148 = vlaneseq
    %v149 = vshrl.u32 %v148, 7
    %v150 = vsub.s32 %v147, %v149
    %v151 = vrot.slane %v144, %v150
    %v153 = vunpack.c.l.s4 1966171168
    %v154 = vunpack.c.0.s8 %v153
    %v155 = vlaneseq
    %v156 = vshrl.u32 %v155, 7
    %v157 = vsub.s32 %v154, %v156
    %v158 = vrot.slane %v151, %v157
    %v160 = vlaneseq
    %vm161 = vcmp.ge.s32.totalorder %v160, 0
    %vm162 = vcmp.lt.s32.totalorder %v160, 256
    %vm163 = vmand %vm161, %vm162
    %164 = vst.msk [vmem:[#allocation7] sm:$0x3] %vm163, %v158
    // Predicated region
    $region18: #{tpu_custom_call.1} parent=1 // pred_check
      _
    $region19: #{tpu_custom_call.1} parent=1 // pred_check_branch
      %166 = sbr.rel (0) target = $region21
    $region20: #{tpu_custom_call.1} parent=1 // pred_region
      %s168 = ssub.s32 32, 32
      %169 = vsyncadd [#allocation4], %s168
      %s171 = sshll.u32 [#allocation7], 4
      %s172 = int_to_ptr.vmem [resolvable:$true] %s171
      %174 = dma.vmem_to_hbm [thread:$0]  %s172, 32, %s2, [#allocation4]
    $region21: #{tpu_custom_call.1} parent=1 // pred_fallthru
      _
    // Predicated region
    $region22: #{tpu_custom_call.1} parent=1 // pred_check
      _
    $region23: #{tpu_custom_call.1} parent=1 // pred_check_branch
      %176 = sbr.rel (0) target = $region25
    $region24: #{tpu_custom_call.1} parent=1 // pred_region
      %177 = dma.done [#allocation4], 32
    $region25: #{tpu_custom_call.1} parent=1 // pred_fallthru
      _
    %178 = vsyncpa [#allocation3], 1
    %179 = vsyncpa [#allocation6], 1
    %180 = vsyncpa [#allocation4], 1

</llo_original>
